<compile_context>
chip_gen: v7x
topology: tpu7x:2x2x1
jax: 0.10.0
libtpu: 0.0.40
codegen_flags: <defaults>
</compile_context>

<pallas_src>
import jax
import jax.numpy as jnp
from jax.experimental import pallas as pl
from jax.experimental.pallas import tpu as pltpu

# ---- small, self-consistent config (stand-ins for the module globals) ----
BATCH_SIZE = 8          # NUM_SEQUENCES in the reference
TIMESTEPS = 8           # SEQUENCE_LENGTH in the reference
INPUT_DIM = 16
HIDDEN_DIM = 32


def _ssm_kernel(x_ref, w_ub_t_ref, b_ub_ref, a_t_ref, out_ref):
    """Single-invocation kernel (everything resident in VMEM).

    x_ref     : (T*B, D)  inputs, time-major, flattened by the wrapper
    w_ub_t_ref: (D, 2H)   [U.weight^T | B.weight^T]  (fused, pre-transposed)
    b_ub_ref  : (1, 2H)   [U.bias | B.bias]
    a_t_ref   : (H, H)    A.weight^T (pre-transposed, no bias)
    out_ref   : (B, T*H)  all hidden states, lane-dense; wrapper reshapes
    """
    TB, _ = x_ref.shape
    H = a_t_ref.shape[0]
    B = out_ref.shape[0]
    T = TB // B

    # --- fused, time-independent projection: ONE (T*B, D) @ (D, 2H) matmul ---
    proj = jnp.dot(x_ref[...], w_ub_t_ref[...],
                   preferred_element_type=jnp.float32) + b_ub_ref[...]
    u_all = proj[:, :H]                       # (T*B, H)
    b_all = jax.nn.sigmoid(proj[:, H:])       # (T*B, H)

    a_t = a_t_ref[...]                        # (H, H) = A^T

    # --- serial gated recurrence over time, fully unrolled (T static, small) ---
    # Only the (B,H)@(H,H) matmul + gate/add are on the serial critical path.
    # Time-major contiguous row slices (no strided gathers, no reshapes).
    h = jnp.zeros((B, H), jnp.float32)
    hs = []
    for t in range(T):
        lo = t * B
        h = b_all[lo:lo + B, :] * jnp.dot(h, a_t,
                                          preferred_element_type=jnp.float32) \
            + u_all[lo:lo + B, :]
        hs.append(h)

    # --- single lane-dense slab store: (B, T*H), T*H a multiple of 128 ---
    out_ref[...] = jnp.concatenate(hs, axis=-1).astype(out_ref.dtype)


def ssm_synaptic_delay_forward(x, params):
    """x: (B, T, D) float32 -> (B, T, H) float32."""
    B, T, D = x.shape
    H = params["A"].shape[0]

    # Wrapper-side layout plumbing (kept out of the kernel / off the serial path):
    #  * time-major flattened activations -> contiguous per-step rows in-kernel
    #  * fused + pre-transposed projection weights -> one in-kernel matmul
    x_tm = jnp.transpose(x, (1, 0, 2)).reshape(T * B, D)            # (T*B, D)
    w_ub_t = jnp.concatenate([params["W_U"].T, params["W_B"].T], 1)  # (D, 2H)
    b_ub = jnp.concatenate([params["b_U"], params["b_B"]], 1)        # (1, 2H)
    a_t = params["A"].T                                              # (H, H)

    vmem_spec = pl.BlockSpec(memory_space=pltpu.MemorySpace.VMEM)

    out_flat = pl.pallas_call(
        _ssm_kernel,
        out_shape=jax.ShapeDtypeStruct((B, T * H), jnp.float32),
        in_specs=[vmem_spec] * 4,
        out_specs=vmem_spec,
    )(x_tm, w_ub_t, b_ub, a_t)

    # Free metadata reshape on HBM back to the module's (B, T, H) output.
    return out_flat.reshape(B, T, H)


def _reference_forward(x, params):
    """Pure-JAX reference of the same semantics (for verification)."""
    xt = jnp.transpose(x, (1, 0, 2))                       # (T, B, D)
    u = xt @ params["W_U"].T + params["b_U"]               # (T, B, H)
    b = jax.nn.sigmoid(xt @ params["W_B"].T + params["b_B"])

    def step(h, tb):
        b_t, u_t = tb
        h_new = b_t * (h @ params["A"].T) + u_t
        return h_new, h_new

    h0 = jnp.zeros((x.shape[0], params["A"].shape[0]), jnp.float32)
    _, hs = jax.lax.scan(step, h0, (b, u))                 # (T, B, H)
    return jnp.transpose(hs, (1, 0, 2))


def init_params(key, input_dim, hidden_dim, timesteps):
    """Deterministic PyTorch-Linear-style init (uniform +/- 1/sqrt(fan_in))."""
    ks = jax.random.split(key, 8)

    def lin_w(k, out_f, in_f):
        bound = 1.0 / jnp.sqrt(in_f)
        return jax.random.uniform(k, (out_f, in_f), jnp.float32, -bound, bound)

    def lin_b(k, out_f, in_f):
        bound = 1.0 / jnp.sqrt(in_f)
        return jax.random.uniform(k, (1, out_f), jnp.float32, -bound, bound)

    return {
        # delay_proj exists in __init__ but is unused in forward; kept for fidelity.
        "W_delay": lin_w(ks[0], timesteps, input_dim),
        "b_delay": lin_b(ks[1], timesteps, input_dim),
        "W_U": lin_w(ks[2], hidden_dim, input_dim),
        "b_U": lin_b(ks[3], hidden_dim, input_dim),
        "W_B": lin_w(ks[4], hidden_dim, input_dim),
        "b_B": lin_b(ks[5], hidden_dim, input_dim),
        "A":   lin_w(ks[6], hidden_dim, hidden_dim),
    }


if __name__ == "__main__":
    key = jax.random.PRNGKey(0)
    k_param, k_x = jax.random.split(key)

    params = init_params(k_param, INPUT_DIM, HIDDEN_DIM, TIMESTEPS)
    x = jax.random.normal(k_x, (BATCH_SIZE, TIMESTEPS, INPUT_DIM), jnp.float32)

    out = ssm_synaptic_delay_forward(x, params)
    out = jax.block_until_ready(out)

    ref = _reference_forward(x, params)
    assert out.shape == (BATCH_SIZE, TIMESTEPS, HIDDEN_DIM)
    assert jnp.allclose(out, ref, atol=1e-4, rtol=1e-4), "mismatch vs JAX reference"

    print("KERNEL_OK")
</pallas_src>

<mosaic_0001>
module attributes {stable_mosaic.version = 11 : i64} {
  func.func @_ssm_kernel(%arg0: memref<64x16xf32, #tpu.memory_space<vmem>>, %arg1: memref<16x64xf32, #tpu.memory_space<vmem>>, %arg2: memref<1x64xf32, #tpu.memory_space<vmem>>, %arg3: memref<32x32xf32, #tpu.memory_space<vmem>>, %arg4: memref<8x256xf32, #tpu.memory_space<vmem>>) attributes {dimension_semantics = [], scalar_prefetch = 0 : i64, scratch_operands = 0 : i64, tpu.core_type = #tpu.core_type<tc>} {
    %c0 = arith.constant 0 : index
    %c0_0 = arith.constant 0 : index
    %0 = vector.load %arg0[%c0, %c0_0] : memref<64x16xf32, #tpu.memory_space<vmem>>, vector<64x16xf32>
    %c0_1 = arith.constant 0 : index
    %c0_2 = arith.constant 0 : index
    %1 = vector.load %arg1[%c0_1, %c0_2] : memref<16x64xf32, #tpu.memory_space<vmem>>, vector<16x64xf32>
    %cst = arith.constant dense<0.000000e+00> : vector<64x64xf32>
    %2 = tpu.matmul %0, %1, %cst {dimension_numbers = #tpu.dot_dimension_numbers<[1], [0], [0], [1], [0, 0, 1, 1], [], []>} : vector<64x16xf32>, vector<16x64xf32>, vector<64x64xf32> -> vector<64x64xf32>
    %c0_3 = arith.constant 0 : index
    %c0_4 = arith.constant 0 : index
    %3 = vector.load %arg2[%c0_3, %c0_4] : memref<1x64xf32, #tpu.memory_space<vmem>>, vector<1x64xf32>
    %4 = vector.broadcast %3 : vector<1x64xf32> to vector<64x64xf32>
    %5 = arith.addf %2, %4 : vector<64x64xf32>
    %6 = vector.extract_strided_slice %5 {offsets = [0, 0], sizes = [64, 32], strides = [1, 1]} : vector<64x64xf32> to vector<64x32xf32>
    %7 = vector.extract_strided_slice %5 {offsets = [0, 32], sizes = [64, 32], strides = [1, 1]} : vector<64x64xf32> to vector<64x32xf32>
    %8 = arith.negf %7 : vector<64x32xf32>
    %9 = math.exp %8 : vector<64x32xf32>
    %cst_5 = arith.constant 1.000000e+00 : f32
    %10 = vector.broadcast %cst_5 : f32 to vector<64x32xf32>
    %11 = arith.addf %10, %9 : vector<64x32xf32>
    %12 = arith.divf %10, %11 : vector<64x32xf32>
    %c0_6 = arith.constant 0 : index
    %c0_7 = arith.constant 0 : index
    %13 = vector.load %arg3[%c0_6, %c0_7] : memref<32x32xf32, #tpu.memory_space<vmem>>, vector<32x32xf32>
    %cst_8 = arith.constant 0.000000e+00 : f32
    %14 = vector.broadcast %cst_8 : f32 to vector<8x32xf32>
    %15 = vector.extract_strided_slice %12 {offsets = [0, 0], sizes = [8, 32], strides = [1, 1]} : vector<64x32xf32> to vector<8x32xf32>
    %cst_9 = arith.constant dense<0.000000e+00> : vector<8x32xf32>
    %16 = tpu.matmul %14, %13, %cst_9 {dimension_numbers = #tpu.dot_dimension_numbers<[1], [0], [0], [1], [0, 0, 1, 1], [], []>} : vector<8x32xf32>, vector<32x32xf32>, vector<8x32xf32> -> vector<8x32xf32>
    %17 = arith.mulf %15, %16 : vector<8x32xf32>
    %18 = vector.extract_strided_slice %6 {offsets = [0, 0], sizes = [8, 32], strides = [1, 1]} : vector<64x32xf32> to vector<8x32xf32>
    %19 = arith.addf %17, %18 : vector<8x32xf32>
    %20 = vector.extract_strided_slice %12 {offsets = [8, 0], sizes = [8, 32], strides = [1, 1]} : vector<64x32xf32> to vector<8x32xf32>
    %cst_10 = arith.constant dense<0.000000e+00> : vector<8x32xf32>
    %21 = tpu.matmul %19, %13, %cst_10 {dimension_numbers = #tpu.dot_dimension_numbers<[1], [0], [0], [1], [0, 0, 1, 1], [], []>} : vector<8x32xf32>, vector<32x32xf32>, vector<8x32xf32> -> vector<8x32xf32>
    %22 = arith.mulf %20, %21 : vector<8x32xf32>
    %23 = vector.extract_strided_slice %6 {offsets = [8, 0], sizes = [8, 32], strides = [1, 1]} : vector<64x32xf32> to vector<8x32xf32>
    %24 = arith.addf %22, %23 : vector<8x32xf32>
    %25 = vector.extract_strided_slice %12 {offsets = [16, 0], sizes = [8, 32], strides = [1, 1]} : vector<64x32xf32> to vector<8x32xf32>
    %cst_11 = arith.constant dense<0.000000e+00> : vector<8x32xf32>
    %26 = tpu.matmul %24, %13, %cst_11 {dimension_numbers = #tpu.dot_dimension_numbers<[1], [0], [0], [1], [0, 0, 1, 1], [], []>} : vector<8x32xf32>, vector<32x32xf32>, vector<8x32xf32> -> vector<8x32xf32>
    %27 = arith.mulf %25, %26 : vector<8x32xf32>
    %28 = vector.extract_strided_slice %6 {offsets = [16, 0], sizes = [8, 32], strides = [1, 1]} : vector<64x32xf32> to vector<8x32xf32>
    %29 = arith.addf %27, %28 : vector<8x32xf32>
    %30 = vector.extract_strided_slice %12 {offsets = [24, 0], sizes = [8, 32], strides = [1, 1]} : vector<64x32xf32> to vector<8x32xf32>
    %cst_12 = arith.constant dense<0.000000e+00> : vector<8x32xf32>
    %31 = tpu.matmul %29, %13, %cst_12 {dimension_numbers = #tpu.dot_dimension_numbers<[1], [0], [0], [1], [0, 0, 1, 1], [], []>} : vector<8x32xf32>, vector<32x32xf32>, vector<8x32xf32> -> vector<8x32xf32>
    %32 = arith.mulf %30, %31 : vector<8x32xf32>
    %33 = vector.extract_strided_slice %6 {offsets = [24, 0], sizes = [8, 32], strides = [1, 1]} : vector<64x32xf32> to vector<8x32xf32>
    %34 = arith.addf %32, %33 : vector<8x32xf32>
    %35 = vector.extract_strided_slice %12 {offsets = [32, 0], sizes = [8, 32], strides = [1, 1]} : vector<64x32xf32> to vector<8x32xf32>
    %cst_13 = arith.constant dense<0.000000e+00> : vector<8x32xf32>
    %36 = tpu.matmul %34, %13, %cst_13 {dimension_numbers = #tpu.dot_dimension_numbers<[1], [0], [0], [1], [0, 0, 1, 1], [], []>} : vector<8x32xf32>, vector<32x32xf32>, vector<8x32xf32> -> vector<8x32xf32>
    %37 = arith.mulf %35, %36 : vector<8x32xf32>
    %38 = vector.extract_strided_slice %6 {offsets = [32, 0], sizes = [8, 32], strides = [1, 1]} : vector<64x32xf32> to vector<8x32xf32>
    %39 = arith.addf %37, %38 : vector<8x32xf32>
    %40 = vector.extract_strided_slice %12 {offsets = [40, 0], sizes = [8, 32], strides = [1, 1]} : vector<64x32xf32> to vector<8x32xf32>
    %cst_14 = arith.constant dense<0.000000e+00> : vector<8x32xf32>
    %41 = tpu.matmul %39, %13, %cst_14 {dimension_numbers = #tpu.dot_dimension_numbers<[1], [0], [0], [1], [0, 0, 1, 1], [], []>} : vector<8x32xf32>, vector<32x32xf32>, vector<8x32xf32> -> vector<8x32xf32>
    %42 = arith.mulf %40, %41 : vector<8x32xf32>
    %43 = vector.extract_strided_slice %6 {offsets = [40, 0], sizes = [8, 32], strides = [1, 1]} : vector<64x32xf32> to vector<8x32xf32>
    %44 = arith.addf %42, %43 : vector<8x32xf32>
    %45 = vector.extract_strided_slice %12 {offsets = [48, 0], sizes = [8, 32], strides = [1, 1]} : vector<64x32xf32> to vector<8x32xf32>
    %cst_15 = arith.constant dense<0.000000e+00> : vector<8x32xf32>
    %46 = tpu.matmul %44, %13, %cst_15 {dimension_numbers = #tpu.dot_dimension_numbers<[1], [0], [0], [1], [0, 0, 1, 1], [], []>} : vector<8x32xf32>, vector<32x32xf32>, vector<8x32xf32> -> vector<8x32xf32>
    %47 = arith.mulf %45, %46 : vector<8x32xf32>
    %48 = vector.extract_strided_slice %6 {offsets = [48, 0], sizes = [8, 32], strides = [1, 1]} : vector<64x32xf32> to vector<8x32xf32>
    %49 = arith.addf %47, %48 : vector<8x32xf32>
    %50 = vector.extract_strided_slice %12 {offsets = [56, 0], sizes = [8, 32], strides = [1, 1]} : vector<64x32xf32> to vector<8x32xf32>
    %cst_16 = arith.constant dense<0.000000e+00> : vector<8x32xf32>
    %51 = tpu.matmul %49, %13, %cst_16 {dimension_numbers = #tpu.dot_dimension_numbers<[1], [0], [0], [1], [0, 0, 1, 1], [], []>} : vector<8x32xf32>, vector<32x32xf32>, vector<8x32xf32> -> vector<8x32xf32>
    %52 = arith.mulf %50, %51 : vector<8x32xf32>
    %53 = vector.extract_strided_slice %6 {offsets = [56, 0], sizes = [8, 32], strides = [1, 1]} : vector<64x32xf32> to vector<8x32xf32>
    %54 = arith.addf %52, %53 : vector<8x32xf32>
    %55 = tpu.concatenate %19, %24, %29, %34, %39, %44, %49, %54 in 1 : vector<8x32xf32>, vector<8x32xf32>, vector<8x32xf32>, vector<8x32xf32>, vector<8x32xf32>, vector<8x32xf32>, vector<8x32xf32>, vector<8x32xf32> -> vector<8x256xf32>
    %c0_17 = arith.constant 0 : index
    %c0_18 = arith.constant 0 : index
    %56 = vector.load %arg4[%c0_17, %c0_18] : memref<8x256xf32, #tpu.memory_space<vmem>>, vector<8x256xf32>
    tpu.vector_store %arg4[%c0_17, %c0_18], %55 {strides = array<i32>} : memref<8x256xf32, #tpu.memory_space<vmem>>, vector<8x256xf32>,
    return
  }
}

</mosaic_0001>

<llo_original>
// kernel: tpu_custom_call.1
$region0: #{tpu_custom_call.1}
  #allocation0 [shape = 'u32[]', space=smem, size = 0x4, offset = 0x4, fixed_abs, tag = 'smem constant byte address 0x4 - core index']
  #allocation1 [shape = 'u32[144,128]{1,0:T(1,128)}', space=vmem, size = 0x12000, scoped, tag = 'internal scratch']
  %s0 = inlined_call_operand.vmem [shape: f32[64,16], index: 0, kind: input, shape index: {}]
  %s1 = inlined_call_operand.vmem [shape: f32[16,64], index: 1, kind: input, shape index: {}]
  %s2 = inlined_call_operand.vmem [shape: f32[1,64], index: 2, kind: input, shape index: {}]
  %s3 = inlined_call_operand.vmem [shape: f32[32,32], index: 3, kind: input, shape index: {}]
  %s4 = inlined_call_operand.hbm [shape: f32[8,256], index: 4, kind: output, shape index: {}]
  %s5 = sld [smem:[#allocation0]]
  $region26: #{tpu_custom_call.1} parent=0
    _
  %s7 = ssub.s32 1, %s5
  %s8 = scalar_select 0, %s7, %s5
  $region1: #{tpu_custom_call.1} parent=0
    #allocation2 [shape = 'u8[8192]{0}', space=vmem, size = 0x2000, scoped, tag = 'output window, operand 0, single buffered']
    #allocation3 [shape = 's32[1]{0}', space=sflag, size = 0x4, scoped, tag = 'scoped memory for tpu_custom_call.1']
    %9 = vsyncpa [#allocation3], 0
    // Predicated region
    $region2: #{tpu_custom_call.1} parent=1 // pred_check
      _
    $region3: #{tpu_custom_call.1} parent=1 // pred_check_branch
      %11 = sbr.rel (0) target = $region5
    $region4: #{tpu_custom_call.1} parent=1 // pred_region
      _
    $region5: #{tpu_custom_call.1} parent=1 // pred_fallthru
      _
    // Predicated region
    $region6: #{tpu_custom_call.1} parent=1 // pred_check
      _
    $region7: #{tpu_custom_call.1} parent=1 // pred_check_branch
      %13 = sbr.rel (0) target = $region9
    $region8: #{tpu_custom_call.1} parent=1 // pred_region
      _
    $region9: #{tpu_custom_call.1} parent=1 // pred_fallthru
      _
    // Predicated region
    $region10: #{tpu_custom_call.1} parent=1 // pred_check
      _
    $region11: #{tpu_custom_call.1} parent=1 // pred_check_branch
      %15 = sbr.rel (0) target = $region13
    $region12: #{tpu_custom_call.1} parent=1 // pred_region
      _
    $region13: #{tpu_custom_call.1} parent=1 // pred_fallthru
      _
    // Predicated region
    $region14: #{tpu_custom_call.1} parent=1 // pred_check
      _
    $region15: #{tpu_custom_call.1} parent=1 // pred_check_branch
      %17 = sbr.rel (0) target = $region17
    $region16: #{tpu_custom_call.1} parent=1 // pred_region
      _
    $region17: #{tpu_custom_call.1} parent=1 // pred_fallthru
      _
    %v18 = vld [vmem:[%s0] sm:$0xff]
    %v19 = vld [vmem:[%s0 + $0x8] sm:$0xff]
    %v20 = vld [vmem:[%s0 + $0x10] sm:$0xff]
    %v21 = vld [vmem:[%s0 + $0x18] sm:$0xff]
    %v22 = vld [vmem:[%s0 + $0x20] sm:$0xff]
    %v23 = vld [vmem:[%s0 + $0x28] sm:$0xff]
    %v24 = vld [vmem:[%s0 + $0x30] sm:$0xff]
    %v25 = vld [vmem:[%s0 + $0x38] sm:$0xff]
    %v26 = vld [vmem:[%s1] sm:$0xff]
    %v27 = vld [vmem:[%s1 + $0x8] sm:$0xff]
    %v28 = vld [vmem:[%s2] sm:$0x1]
    %v30 = vlaneseq
    %v31 = vshrl.u32 %v30, 7
    %v32 = vsub.s32 0, %v31
    %v33 = vrot.slane %v28, %v32
    %vm35 = vcmask 130048
    %v37 = vsel %vm35, %v18, 0
    %v40 = vsel %vm35, %v19, 0
    %v43 = vsel %vm35, %v20, 0
    %v46 = vsel %vm35, %v21, 0
    %v49 = vsel %vm35, %v22, 0
    %v52 = vsel %vm35, %v23, 0
    %v55 = vsel %vm35, %v24, 0
    %v58 = vsel %vm35, %v25, 0
    %60 = vmatprep.subr.mxu0 0.0
    %61 = vmatpush1.msra.mxu0 %v26
    %62 = vmatprep.subr.mxu0 0.0
    %63 = vmatpush1.msra.mxu0 %v27
    %64 = vmatprep.subr.mxu0 0.0
    %65 = vmatpush1.msra.mxu0 0.0
    %66 = vmatprep.subr.mxu0 0.0
    %67 = vmatpush1.msra.mxu0 0.0
    %68 = vmatprep.subr.mxu0 0.0
    %69 = vmatpush1.msra.mxu0 0.0
    %70 = vmatprep.subr.mxu0 0.0
    %71 = vmatpush1.msra.mxu0 0.0
    %72 = vmatprep.subr.mxu0 0.0
    %73 = vmatpush1.msra.mxu0 0.0
    %74 = vmatprep.subr.mxu0 0.0
    %75 = vmatpush1.msra.mxu0 0.0
    %76 = vmatprep.subr.mxu0 0.0
    %77 = vmatpush1.msra.mxu0 0.0
    %78 = vmatprep.subr.mxu0 0.0
    %79 = vmatpush1.msra.mxu0 0.0
    %80 = vmatprep.subr.mxu0 0.0
    %81 = vmatpush1.msra.mxu0 0.0
    %82 = vmatprep.subr.mxu0 0.0
    %83 = vmatpush1.msra.mxu0 0.0
    %84 = vmatprep.subr.mxu0 0.0
    %85 = vmatpush1.msra.mxu0 0.0
    %86 = vmatprep.subr.mxu0 0.0
    %87 = vmatpush1.msra.mxu0 0.0
    %88 = vmatprep.subr.mxu0 0.0
    %89 = vmatpush1.msra.mxu0 0.0
    %90 = vmatprep.subr.mxu0 0.0
    %91 = vmatpush1.msra.mxu0 0.0
    %92 = vmatprep.subr.mxu0 0.0
    %93 = vmatpush1.msra.mxu0 0.0
    %94 = vmatprep.subr.mxu0 0.0
    %95 = vmatpush1.msra.mxu0 0.0
    %96 = vmatprep.subr.mxu0 0.0
    %97 = vmatpush1.msra.mxu0 0.0
    %98 = vmatprep.subr.mxu0 0.0
    %99 = vmatpush1.msra.mxu0 0.0
    %100 = vmatprep.subr.mxu0 0.0
    %101 = vmatpush1.msra.mxu0 0.0
    %102 = vmatprep.subr.mxu0 0.0
    %103 = vmatpush1.msra.mxu0 0.0
    %104 = vmatprep.subr.mxu0 0.0
    %105 = vmatpush1.msra.mxu0 0.0
    %106 = vmatprep.subr.mxu0 0.0
    %107 = vmatpush1.msra.mxu0 0.0
    %108 = vmatprep.subr.mxu0 0.0
    %109 = vmatpush1.msra.mxu0 0.0
    %110 = vmatprep.subr.mxu0 0.0
    %111 = vmatpush1.msra.mxu0 0.0
    %112 = vmatprep.subr.mxu0 0.0
    %113 = vmatpush1.msra.mxu0 0.0
    %114 = vmatprep.subr.mxu0 0.0
    %115 = vmatpush1.msra.mxu0 0.0
    %116 = vmatprep.subr.mxu0 0.0
    %117 = vmatpush1.msra.mxu0 0.0
    %118 = vmatprep.subr.mxu0 0.0
    %119 = vmatpush1.msra.mxu0 0.0
    %120 = vmatprep.subr.mxu0 0.0
    %121 = vmatpush1.msra.mxu0 0.0
    %122 = vmatprep.subr.mxu0 0.0
    %123 = vmatpush1.msra.mxu0 0.0
    %124 = vmatprep.mubr.f32.mxu0 0.0
    %125 = vmatmul.mubr.f32.gmra.mrb[0].mxu0 %v37
    %v126 = vpop.f32.mrb[0].mxu0
    %v127 = vadd.f32 %v33, %v126
    %v128 = vpop.f32.mrb[0].mxu0
    %129 = vmatprep.mubr.f32.mxu0 0.0
    %130 = vmatmul.mubr.f32.gmra.mrb[0].mxu0 %v40
    %v131 = vpop.f32.mrb[0].mxu0
    %v132 = vadd.f32 %v33, %v131
    %v133 = vpop.f32.mrb[0].mxu0
    %134 = vmatprep.mubr.f32.mxu0 0.0
    %135 = vmatmul.mubr.f32.gmra.mrb[0].mxu0 %v43
    %v136 = vpop.f32.mrb[0].mxu0
    %v137 = vadd.f32 %v33, %v136
    %v138 = vpop.f32.mrb[0].mxu0
    %139 = vmatprep.mubr.f32.mxu0 0.0
    %140 = vmatmul.mubr.f32.gmra.mrb[0].mxu0 %v46
    %v141 = vpop.f32.mrb[0].mxu0
    %v142 = vadd.f32 %v33, %v141
    %v143 = vpop.f32.mrb[0].mxu0
    %144 = vmatprep.mubr.f32.mxu0 0.0
    %145 = vmatmul.mubr.f32.gmra.mrb[0].mxu0 %v49
    %v146 = vpop.f32.mrb[0].mxu0
    %v147 = vadd.f32 %v33, %v146
    %v148 = vpop.f32.mrb[0].mxu0
    %149 = vmatprep.mubr.f32.mxu0 0.0
    %150 = vmatmul.mubr.f32.gmra.mrb[0].mxu0 %v52
    %v151 = vpop.f32.mrb[0].mxu0
    %v152 = vadd.f32 %v33, %v151
    %v153 = vpop.f32.mrb[0].mxu0
    %154 = vmatprep.mubr.f32.mxu0 0.0
    %155 = vmatmul.mubr.f32.gmra.mrb[0].mxu0 %v55
    %v156 = vpop.f32.mrb[0].mxu0
    %v157 = vadd.f32 %v33, %v156
    %v158 = vpop.f32.mrb[0].mxu0
    %159 = vmatprep.mubr.f32.mxu0 0.0
    %160 = vmatmul.mubr.f32.gmra.mrb[0].mxu0 %v58
    %v161 = vpop.f32.mrb[0].mxu0
    %v162 = vadd.f32 %v33, %v161
    %v163 = vpop.f32.mrb[0].mxu0
    %164 = vdwg.mxu0
    %v165 = vxor.u32 %v127, 2147483648
    %v166 = vxor.u32 %v132, 2147483648
    %v167 = vxor.u32 %v137, 2147483648
    %v168 = vxor.u32 %v142, 2147483648
    %v169 = vxor.u32 %v147, 2147483648
    %v170 = vxor.u32 %v152, 2147483648
    %v171 = vxor.u32 %v157, 2147483648
    %v172 = vxor.u32 %v162, 2147483648
    %v173 = vmul.f32 %v165, 1.442695
    %v174 = vpow.pop %v173
    %v175 = vmul.f32 %v166, 1.442695
    %v176 = vpow.pop %v175
    %v177 = vmul.f32 %v167, 1.442695
    %v178 = vpow.pop %v177
    %v179 = vmul.f32 %v168, 1.442695
    %v180 = vpow.pop %v179
    %v181 = vmul.f32 %v169, 1.442695
    %v182 = vpow.pop %v181
    %v183 = vmul.f32 %v170, 1.442695
    %v184 = vpow.pop %v183
    %v185 = vmul.f32 %v171, 1.442695
    %v186 = vpow.pop %v185
    %v187 = vmul.f32 %v172, 1.442695
    %v188 = vpow.pop %v187
    %v189 = vadd.f32 %v174, 1.0
    %v190 = vadd.f32 %v176, 1.0
    %v191 = vadd.f32 %v178, 1.0
    %v192 = vadd.f32 %v180, 1.0
    %v193 = vadd.f32 %v182, 1.0
    %v194 = vadd.f32 %v184, 1.0
    %v195 = vadd.f32 %v186, 1.0
    %v196 = vadd.f32 %v188, 1.0
    %v197 = vrcp.pop %v189
    %v198 = vmul.f32 1.0, %v197
    %v199 = vrcp.pop %v190
    %v200 = vmul.f32 1.0, %v199
    %v201 = vrcp.pop %v191
    %v202 = vmul.f32 1.0, %v201
    %v203 = vrcp.pop %v192
    %v204 = vmul.f32 1.0, %v203
    %v205 = vrcp.pop %v193
    %v206 = vmul.f32 1.0, %v205
    %v207 = vrcp.pop %v194
    %v208 = vmul.f32 1.0, %v207
    %v209 = vrcp.pop %v195
    %v210 = vmul.f32 1.0, %v209
    %v211 = vrcp.pop %v196
    %v212 = vmul.f32 1.0, %v211
    %v213 = vld [vmem:[%s3] sm:$0xff]
    %v214 = vld [vmem:[%s3 + $0x8] sm:$0xff]
    %v215 = vld [vmem:[%s3 + $0x10] sm:$0xff]
    %v216 = vld [vmem:[%s3 + $0x18] sm:$0xff]
    %vm217 = vcmask 261120
    %v219 = vsel %vm217, 0.0, 0
    %221 = vmatprep.subr.mxu0 0.0
    %222 = vmatpush1.msra.mxu0 %v213
    %223 = vmatprep.subr.mxu0 0.0
    %224 = vmatpush1.msra.mxu0 %v214
    %225 = vmatprep.subr.mxu0 0.0
    %226 = vmatpush1.msra.mxu0 %v215
    %227 = vmatprep.subr.mxu0 0.0
    %228 = vmatpush1.msra.mxu0 %v216
    %229 = vmatprep.subr.mxu0 0.0
    %230 = vmatpush1.msra.mxu0 0.0
    %231 = vmatprep.subr.mxu0 0.0
    %232 = vmatpush1.msra.mxu0 0.0
    %233 = vmatprep.subr.mxu0 0.0
    %234 = vmatpush1.msra.mxu0 0.0
    %235 = vmatprep.subr.mxu0 0.0
    %236 = vmatpush1.msra.mxu0 0.0
    %237 = vmatprep.subr.mxu0 0.0
    %238 = vmatpush1.msra.mxu0 0.0
    %239 = vmatprep.subr.mxu0 0.0
    %240 = vmatpush1.msra.mxu0 0.0
    %241 = vmatprep.subr.mxu0 0.0
    %242 = vmatpush1.msra.mxu0 0.0
    %243 = vmatprep.subr.mxu0 0.0
    %244 = vmatpush1.msra.mxu0 0.0
    %245 = vmatprep.subr.mxu0 0.0
    %246 = vmatpush1.msra.mxu0 0.0
    %247 = vmatprep.subr.mxu0 0.0
    %248 = vmatpush1.msra.mxu0 0.0
    %249 = vmatprep.subr.mxu0 0.0
    %250 = vmatpush1.msra.mxu0 0.0
    %251 = vmatprep.subr.mxu0 0.0
    %252 = vmatpush1.msra.mxu0 0.0
    %253 = vmatprep.subr.mxu0 0.0
    %254 = vmatpush1.msra.mxu0 0.0
    %255 = vmatprep.subr.mxu0 0.0
    %256 = vmatpush1.msra.mxu0 0.0
    %257 = vmatprep.subr.mxu0 0.0
    %258 = vmatpush1.msra.mxu0 0.0
    %259 = vmatprep.subr.mxu0 0.0
    %260 = vmatpush1.msra.mxu0 0.0
    %261 = vmatprep.subr.mxu0 0.0
    %262 = vmatpush1.msra.mxu0 0.0
    %263 = vmatprep.subr.mxu0 0.0
    %264 = vmatpush1.msra.mxu0 0.0
    %265 = vmatprep.subr.mxu0 0.0
    %266 = vmatpush1.msra.mxu0 0.0
    %267 = vmatprep.subr.mxu0 0.0
    %268 = vmatpush1.msra.mxu0 0.0
    %269 = vmatprep.subr.mxu0 0.0
    %270 = vmatpush1.msra.mxu0 0.0
    %271 = vmatprep.subr.mxu0 0.0
    %272 = vmatpush1.msra.mxu0 0.0
    %273 = vmatprep.subr.mxu0 0.0
    %274 = vmatpush1.msra.mxu0 0.0
    %275 = vmatprep.subr.mxu0 0.0
    %276 = vmatpush1.msra.mxu0 0.0
    %277 = vmatprep.subr.mxu0 0.0
    %278 = vmatpush1.msra.mxu0 0.0
    %279 = vmatprep.subr.mxu0 0.0
    %280 = vmatpush1.msra.mxu0 0.0
    %281 = vmatprep.subr.mxu0 0.0
    %282 = vmatpush1.msra.mxu0 0.0
    %283 = vmatprep.subr.mxu0 0.0
    %284 = vmatpush1.msra.mxu0 0.0
    %285 = vmatprep.mubr.f32.mxu0 0.0
    %286 = vmatmul.mubr.f32.gmra.mrb[0].mxu0 %v219
    %v287 = vpop.f32.mrb[0].mxu0
    %v288 = vadd.f32 0.0, %v287
    %v289 = vpop.f32.mrb[0].mxu0
    %290 = vdwg.mxu0
    %292 = vrot.lane.b32.xlu0 %v288, 32
    %v293 = vpop.permute.xlu0 %292
    %v295 = vmul.f32 %v198, %v293
    %297 = vrot.lane.b32.xlu0 %v127, 32
    %v298 = vpop.permute.xlu0 %297
    %v300 = vadd.f32 %v295, %v298
    %302 = vrot.lane.b32.xlu0 %v300, 96
    %v303 = vpop.permute.xlu0 %302
    %v304 = vsel %vm217, %v303, 0
    %306 = vmatprep.subr.mxu0 0.0
    %307 = vmatpush1.msra.mxu0 %v213
    %308 = vmatprep.subr.mxu0 0.0
    %309 = vmatpush1.msra.mxu0 %v214
    %310 = vmatprep.subr.mxu0 0.0
    %311 = vmatpush1.msra.mxu0 %v215
    %312 = vmatprep.subr.mxu0 0.0
    %313 = vmatpush1.msra.mxu0 %v216
    %314 = vmatprep.subr.mxu0 0.0
    %315 = vmatpush1.msra.mxu0 0.0
    %316 = vmatprep.subr.mxu0 0.0
    %317 = vmatpush1.msra.mxu0 0.0
    %318 = vmatprep.subr.mxu0 0.0
    %319 = vmatpush1.msra.mxu0 0.0
    %320 = vmatprep.subr.mxu0 0.0
    %321 = vmatpush1.msra.mxu0 0.0
    %322 = vmatprep.subr.mxu0 0.0
    %323 = vmatpush1.msra.mxu0 0.0
    %324 = vmatprep.subr.mxu0 0.0
    %325 = vmatpush1.msra.mxu0 0.0
    %326 = vmatprep.subr.mxu0 0.0
    %327 = vmatpush1.msra.mxu0 0.0
    %328 = vmatprep.subr.mxu0 0.0
    %329 = vmatpush1.msra.mxu0 0.0
    %330 = vmatprep.subr.mxu0 0.0
    %331 = vmatpush1.msra.mxu0 0.0
    %332 = vmatprep.subr.mxu0 0.0
    %333 = vmatpush1.msra.mxu0 0.0
    %334 = vmatprep.subr.mxu0 0.0
    %335 = vmatpush1.msra.mxu0 0.0
    %336 = vmatprep.subr.mxu0 0.0
    %337 = vmatpush1.msra.mxu0 0.0
    %338 = vmatprep.subr.mxu0 0.0
    %339 = vmatpush1.msra.mxu0 0.0
    %340 = vmatprep.subr.mxu0 0.0
    %341 = vmatpush1.msra.mxu0 0.0
    %342 = vmatprep.subr.mxu0 0.0
    %343 = vmatpush1.msra.mxu0 0.0
    %344 = vmatprep.subr.mxu0 0.0
    %345 = vmatpush1.msra.mxu0 0.0
    %346 = vmatprep.subr.mxu0 0.0
    %347 = vmatpush1.msra.mxu0 0.0
    %348 = vmatprep.subr.mxu0 0.0
    %349 = vmatpush1.msra.mxu0 0.0
    %350 = vmatprep.subr.mxu0 0.0
    %351 = vmatpush1.msra.mxu0 0.0
    %352 = vmatprep.subr.mxu0 0.0
    %353 = vmatpush1.msra.mxu0 0.0
    %354 = vmatprep.subr.mxu0 0.0
    %355 = vmatpush1.msra.mxu0 0.0
    %356 = vmatprep.subr.mxu0 0.0
    %357 = vmatpush1.msra.mxu0 0.0
    %358 = vmatprep.subr.mxu0 0.0
    %359 = vmatpush1.msra.mxu0 0.0
    %360 = vmatprep.subr.mxu0 0.0
    %361 = vmatpush1.msra.mxu0 0.0
    %362 = vmatprep.subr.mxu0 0.0
    %363 = vmatpush1.msra.mxu0 0.0
    %364 = vmatprep.subr.mxu0 0.0
    %365 = vmatpush1.msra.mxu0 0.0
    %366 = vmatprep.subr.mxu0 0.0
    %367 = vmatpush1.msra.mxu0 0.0
    %368 = vmatprep.subr.mxu0 0.0
    %369 = vmatpush1.msra.mxu0 0.0
    %370 = vmatprep.mubr.f32.mxu0 0.0
    %371 = vmatmul.mubr.f32.gmra.mrb[0].mxu0 %v304
    %v372 = vpop.f32.mrb[0].mxu0
    %v373 = vadd.f32 0.0, %v372
    %v374 = vpop.f32.mrb[0].mxu0
    %375 = vdwg.mxu0
    %377 = vrot.lane.b32.xlu0 %v373, 32
    %v378 = vpop.permute.xlu0 %377
    %v380 = vmul.f32 %v200, %v378
    %382 = vrot.lane.b32.xlu0 %v132, 32
    %v383 = vpop.permute.xlu0 %382
    %v385 = vadd.f32 %v380, %v383
    %387 = vrot.lane.b32.xlu0 %v385, 96
    %v388 = vpop.permute.xlu0 %387
    %v389 = vsel %vm217, %v388, 0
    %391 = vmatprep.subr.mxu0 0.0
    %392 = vmatpush1.msra.mxu0 %v213
    %393 = vmatprep.subr.mxu0 0.0
    %394 = vmatpush1.msra.mxu0 %v214
    %395 = vmatprep.subr.mxu0 0.0
    %396 = vmatpush1.msra.mxu0 %v215
    %397 = vmatprep.subr.mxu0 0.0
    %398 = vmatpush1.msra.mxu0 %v216
    %399 = vmatprep.subr.mxu0 0.0
    %400 = vmatpush1.msra.mxu0 0.0
    %401 = vmatprep.subr.mxu0 0.0
    %402 = vmatpush1.msra.mxu0 0.0
    %403 = vmatprep.subr.mxu0 0.0
    %404 = vmatpush1.msra.mxu0 0.0
    %405 = vmatprep.subr.mxu0 0.0
    %406 = vmatpush1.msra.mxu0 0.0
    %407 = vmatprep.subr.mxu0 0.0
    %408 = vmatpush1.msra.mxu0 0.0
    %409 = vmatprep.subr.mxu0 0.0
    %410 = vmatpush1.msra.mxu0 0.0
    %411 = vmatprep.subr.mxu0 0.0
    %412 = vmatpush1.msra.mxu0 0.0
    %413 = vmatprep.subr.mxu0 0.0
    %414 = vmatpush1.msra.mxu0 0.0
    %415 = vmatprep.subr.mxu0 0.0
    %416 = vmatpush1.msra.mxu0 0.0
    %417 = vmatprep.subr.mxu0 0.0
    %418 = vmatpush1.msra.mxu0 0.0
    %419 = vmatprep.subr.mxu0 0.0
    %420 = vmatpush1.msra.mxu0 0.0
    %421 = vmatprep.subr.mxu0 0.0
    %422 = vmatpush1.msra.mxu0 0.0
    %423 = vmatprep.subr.mxu0 0.0
    %424 = vmatpush1.msra.mxu0 0.0
    %425 = vmatprep.subr.mxu0 0.0
    %426 = vmatpush1.msra.mxu0 0.0
    %427 = vmatprep.subr.mxu0 0.0
    %428 = vmatpush1.msra.mxu0 0.0
    %429 = vmatprep.subr.mxu0 0.0
    %430 = vmatpush1.msra.mxu0 0.0
    %431 = vmatprep.subr.mxu0 0.0
    %432 = vmatpush1.msra.mxu0 0.0
    %433 = vmatprep.subr.mxu0 0.0
    %434 = vmatpush1.msra.mxu0 0.0
    %435 = vmatprep.subr.mxu0 0.0
    %436 = vmatpush1.msra.mxu0 0.0
    %437 = vmatprep.subr.mxu0 0.0
    %438 = vmatpush1.msra.mxu0 0.0
    %439 = vmatprep.subr.mxu0 0.0
    %440 = vmatpush1.msra.mxu0 0.0
    %441 = vmatprep.subr.mxu0 0.0
    %442 = vmatpush1.msra.mxu0 0.0
    %443 = vmatprep.subr.mxu0 0.0
    %444 = vmatpush1.msra.mxu0 0.0
    %445 = vmatprep.subr.mxu0 0.0
    %446 = vmatpush1.msra.mxu0 0.0
    %447 = vmatprep.subr.mxu0 0.0
    %448 = vmatpush1.msra.mxu0 0.0
    %449 = vmatprep.subr.mxu0 0.0
    %450 = vmatpush1.msra.mxu0 0.0
    %451 = vmatprep.subr.mxu0 0.0
    %452 = vmatpush1.msra.mxu0 0.0
    %453 = vmatprep.subr.mxu0 0.0
    %454 = vmatpush1.msra.mxu0 0.0
    %455 = vmatprep.mubr.f32.mxu0 0.0
    %456 = vmatmul.mubr.f32.gmra.mrb[0].mxu0 %v389
    %v457 = vpop.f32.mrb[0].mxu0
    %v458 = vadd.f32 0.0, %v457
    %v459 = vpop.f32.mrb[0].mxu0
    %460 = vdwg.mxu0
    %462 = vrot.lane.b32.xlu0 %v458, 32
    %v463 = vpop.permute.xlu0 %462
    %v465 = vmul.f32 %v202, %v463
    %467 = vrot.lane.b32.xlu0 %v137, 32
    %v468 = vpop.permute.xlu0 %467
    %v470 = vadd.f32 %v465, %v468
    %472 = vrot.lane.b32.xlu0 %v470, 96
    %v473 = vpop.permute.xlu0 %472
    %v474 = vsel %vm217, %v473, 0
    %476 = vmatprep.subr.mxu0 0.0
    %477 = vmatpush1.msra.mxu0 %v213
    %478 = vmatprep.subr.mxu0 0.0
    %479 = vmatpush1.msra.mxu0 %v214
    %480 = vmatprep.subr.mxu0 0.0
    %481 = vmatpush1.msra.mxu0 %v215
    %482 = vmatprep.subr.mxu0 0.0
    %483 = vmatpush1.msra.mxu0 %v216
    %484 = vmatprep.subr.mxu0 0.0
    %485 = vmatpush1.msra.mxu0 0.0
    %486 = vmatprep.subr.mxu0 0.0
    %487 = vmatpush1.msra.mxu0 0.0
    %488 = vmatprep.subr.mxu0 0.0
    %489 = vmatpush1.msra.mxu0 0.0
    %490 = vmatprep.subr.mxu0 0.0
    %491 = vmatpush1.msra.mxu0 0.0
    %492 = vmatprep.subr.mxu0 0.0
    %493 = vmatpush1.msra.mxu0 0.0
    %494 = vmatprep.subr.mxu0 0.0
    %495 = vmatpush1.msra.mxu0 0.0
    %496 = vmatprep.subr.mxu0 0.0
    %497 = vmatpush1.msra.mxu0 0.0
    %498 = vmatprep.subr.mxu0 0.0
    %499 = vmatpush1.msra.mxu0 0.0
    %500 = vmatprep.subr.mxu0 0.0
    %501 = vmatpush1.msra.mxu0 0.0
    %502 = vmatprep.subr.mxu0 0.0
    %503 = vmatpush1.msra.mxu0 0.0
    %504 = vmatprep.subr.mxu0 0.0
    %505 = vmatpush1.msra.mxu0 0.0
    %506 = vmatprep.subr.mxu0 0.0
    %507 = vmatpush1.msra.mxu0 0.0
    %508 = vmatprep.subr.mxu0 0.0
    %509 = vmatpush1.msra.mxu0 0.0
    %510 = vmatprep.subr.mxu0 0.0
    %511 = vmatpush1.msra.mxu0 0.0
    %512 = vmatprep.subr.mxu0 0.0
    %513 = vmatpush1.msra.mxu0 0.0
    %514 = vmatprep.subr.mxu0 0.0
    %515 = vmatpush1.msra.mxu0 0.0
    %516 = vmatprep.subr.mxu0 0.0
    %517 = vmatpush1.msra.mxu0 0.0
    %518 = vmatprep.subr.mxu0 0.0
    %519 = vmatpush1.msra.mxu0 0.0
    %520 = vmatprep.subr.mxu0 0.0
    %521 = vmatpush1.msra.mxu0 0.0
    %522 = vmatprep.subr.mxu0 0.0
    %523 = vmatpush1.msra.mxu0 0.0
    %524 = vmatprep.subr.mxu0 0.0
    %525 = vmatpush1.msra.mxu0 0.0
    %526 = vmatprep.subr.mxu0 0.0
    %527 = vmatpush1.msra.mxu0 0.0
    %528 = vmatprep.subr.mxu0 0.0
    %529 = vmatpush1.msra.mxu0 0.0
    %530 = vmatprep.subr.mxu0 0.0
    %531 = vmatpush1.msra.mxu0 0.0
    %532 = vmatprep.subr.mxu0 0.0
    %533 = vmatpush1.msra.mxu0 0.0
    %534 = vmatprep.subr.mxu0 0.0
    %535 = vmatpush1.msra.mxu0 0.0
    %536 = vmatprep.subr.mxu0 0.0
    %537 = vmatpush1.msra.mxu0 0.0
    %538 = vmatprep.subr.mxu0 0.0
    %539 = vmatpush1.msra.mxu0 0.0
    %540 = vmatprep.mubr.f32.mxu0 0.0
    %541 = vmatmul.mubr.f32.gmra.mrb[0].mxu0 %v474
    %v542 = vpop.f32.mrb[0].mxu0
    %v543 = vadd.f32 0.0, %v542
    %v544 = vpop.f32.mrb[0].mxu0
    %545 = vdwg.mxu0
    %547 = vrot.lane.b32.xlu0 %v543, 32
    %v548 = vpop.permute.xlu0 %547
    %v550 = vmul.f32 %v204, %v548
    %552 = vrot.lane.b32.xlu0 %v142, 32
    %v553 = vpop.permute.xlu0 %552
    %v555 = vadd.f32 %v550, %v553
    %557 = vrot.lane.b32.xlu0 %v555, 96
    %v558 = vpop.permute.xlu0 %557
    %v559 = vsel %vm217, %v558, 0
    %561 = vmatprep.subr.mxu0 0.0
    %562 = vmatpush1.msra.mxu0 %v213
    %563 = vmatprep.subr.mxu0 0.0
    %564 = vmatpush1.msra.mxu0 %v214
    %565 = vmatprep.subr.mxu0 0.0
    %566 = vmatpush1.msra.mxu0 %v215
    %567 = vmatprep.subr.mxu0 0.0
    %568 = vmatpush1.msra.mxu0 %v216
    %569 = vmatprep.subr.mxu0 0.0
    %570 = vmatpush1.msra.mxu0 0.0
    %571 = vmatprep.subr.mxu0 0.0
    %572 = vmatpush1.msra.mxu0 0.0
    %573 = vmatprep.subr.mxu0 0.0
    %574 = vmatpush1.msra.mxu0 0.0
    %575 = vmatprep.subr.mxu0 0.0
    %576 = vmatpush1.msra.mxu0 0.0
    %577 = vmatprep.subr.mxu0 0.0
    %578 = vmatpush1.msra.mxu0 0.0
    %579 = vmatprep.subr.mxu0 0.0
    %580 = vmatpush1.msra.mxu0 0.0
    %581 = vmatprep.subr.mxu0 0.0
    %582 = vmatpush1.msra.mxu0 0.0
    %583 = vmatprep.subr.mxu0 0.0
    %584 = vmatpush1.msra.mxu0 0.0
    %585 = vmatprep.subr.mxu0 0.0
    %586 = vmatpush1.msra.mxu0 0.0
    %587 = vmatprep.subr.mxu0 0.0
    %588 = vmatpush1.msra.mxu0 0.0
    %589 = vmatprep.subr.mxu0 0.0
    %590 = vmatpush1.msra.mxu0 0.0
    %591 = vmatprep.subr.mxu0 0.0
    %592 = vmatpush1.msra.mxu0 0.0
    %593 = vmatprep.subr.mxu0 0.0
    %594 = vmatpush1.msra.mxu0 0.0
    %595 = vmatprep.subr.mxu0 0.0
    %596 = vmatpush1.msra.mxu0 0.0
    %597 = vmatprep.subr.mxu0 0.0
    %598 = vmatpush1.msra.mxu0 0.0
    %599 = vmatprep.subr.mxu0 0.0
    %600 = vmatpush1.msra.mxu0 0.0
    %601 = vmatprep.subr.mxu0 0.0
    %602 = vmatpush1.msra.mxu0 0.0
    %603 = vmatprep.subr.mxu0 0.0
    %604 = vmatpush1.msra.mxu0 0.0
    %605 = vmatprep.subr.mxu0 0.0
    %606 = vmatpush1.msra.mxu0 0.0
    %607 = vmatprep.subr.mxu0 0.0
    %608 = vmatpush1.msra.mxu0 0.0
    %609 = vmatprep.subr.mxu0 0.0
    %610 = vmatpush1.msra.mxu0 0.0
    %611 = vmatprep.subr.mxu0 0.0
    %612 = vmatpush1.msra.mxu0 0.0
    %613 = vmatprep.subr.mxu0 0.0
    %614 = vmatpush1.msra.mxu0 0.0
    %615 = vmatprep.subr.mxu0 0.0
    %616 = vmatpush1.msra.mxu0 0.0
    %617 = vmatprep.subr.mxu0 0.0
    %618 = vmatpush1.msra.mxu0 0.0
    %619 = vmatprep.subr.mxu0 0.0
    %620 = vmatpush1.msra.mxu0 0.0
    %621 = vmatprep.subr.mxu0 0.0
    %622 = vmatpush1.msra.mxu0 0.0
    %623 = vmatprep.subr.mxu0 0.0
    %624 = vmatpush1.msra.mxu0 0.0
    %625 = vmatprep.mubr.f32.mxu0 0.0
    %626 = vmatmul.mubr.f32.gmra.mrb[0].mxu0 %v559
    %v627 = vpop.f32.mrb[0].mxu0
    %v628 = vadd.f32 0.0, %v627
    %v629 = vpop.f32.mrb[0].mxu0
    %630 = vdwg.mxu0
    %632 = vrot.lane.b32.xlu0 %v628, 32
    %v633 = vpop.permute.xlu0 %632
    %v635 = vmul.f32 %v206, %v633
    %637 = vrot.lane.b32.xlu0 %v147, 32
    %v638 = vpop.permute.xlu0 %637
    %v640 = vadd.f32 %v635, %v638
    %642 = vrot.lane.b32.xlu0 %v640, 96
    %v643 = vpop.permute.xlu0 %642
    %v644 = vsel %vm217, %v643, 0
    %646 = vmatprep.subr.mxu0 0.0
    %647 = vmatpush1.msra.mxu0 %v213
    %648 = vmatprep.subr.mxu0 0.0
    %649 = vmatpush1.msra.mxu0 %v214
    %650 = vmatprep.subr.mxu0 0.0
    %651 = vmatpush1.msra.mxu0 %v215
    %652 = vmatprep.subr.mxu0 0.0
    %653 = vmatpush1.msra.mxu0 %v216
    %654 = vmatprep.subr.mxu0 0.0
    %655 = vmatpush1.msra.mxu0 0.0
    %656 = vmatprep.subr.mxu0 0.0
    %657 = vmatpush1.msra.mxu0 0.0
    %658 = vmatprep.subr.mxu0 0.0
    %659 = vmatpush1.msra.mxu0 0.0
    %660 = vmatprep.subr.mxu0 0.0
    %661 = vmatpush1.msra.mxu0 0.0
    %662 = vmatprep.subr.mxu0 0.0
    %663 = vmatpush1.msra.mxu0 0.0
    %664 = vmatprep.subr.mxu0 0.0
    %665 = vmatpush1.msra.mxu0 0.0
    %666 = vmatprep.subr.mxu0 0.0
    %667 = vmatpush1.msra.mxu0 0.0
    %668 = vmatprep.subr.mxu0 0.0
    %669 = vmatpush1.msra.mxu0 0.0
    %670 = vmatprep.subr.mxu0 0.0
    %671 = vmatpush1.msra.mxu0 0.0
    %672 = vmatprep.subr.mxu0 0.0
    %673 = vmatpush1.msra.mxu0 0.0
    %674 = vmatprep.subr.mxu0 0.0
    %675 = vmatpush1.msra.mxu0 0.0
    %676 = vmatprep.subr.mxu0 0.0
    %677 = vmatpush1.msra.mxu0 0.0
    %678 = vmatprep.subr.mxu0 0.0
    %679 = vmatpush1.msra.mxu0 0.0
    %680 = vmatprep.subr.mxu0 0.0
    %681 = vmatpush1.msra.mxu0 0.0
    %682 = vmatprep.subr.mxu0 0.0
    %683 = vmatpush1.msra.mxu0 0.0
    %684 = vmatprep.subr.mxu0 0.0
    %685 = vmatpush1.msra.mxu0 0.0
    %686 = vmatprep.subr.mxu0 0.0
    %687 = vmatpush1.msra.mxu0 0.0
    %688 = vmatprep.subr.mxu0 0.0
    %689 = vmatpush1.msra.mxu0 0.0
    %690 = vmatprep.subr.mxu0 0.0
    %691 = vmatpush1.msra.mxu0 0.0
    %692 = vmatprep.subr.mxu0 0.0
    %693 = vmatpush1.msra.mxu0 0.0
    %694 = vmatprep.subr.mxu0 0.0
    %695 = vmatpush1.msra.mxu0 0.0
    %696 = vmatprep.subr.mxu0 0.0
    %697 = vmatpush1.msra.mxu0 0.0
    %698 = vmatprep.subr.mxu0 0.0
    %699 = vmatpush1.msra.mxu0 0.0
    %700 = vmatprep.subr.mxu0 0.0
    %701 = vmatpush1.msra.mxu0 0.0
    %702 = vmatprep.subr.mxu0 0.0
    %703 = vmatpush1.msra.mxu0 0.0
    %704 = vmatprep.subr.mxu0 0.0
    %705 = vmatpush1.msra.mxu0 0.0
    %706 = vmatprep.subr.mxu0 0.0
    %707 = vmatpush1.msra.mxu0 0.0
    %708 = vmatprep.subr.mxu0 0.0
    %709 = vmatpush1.msra.mxu0 0.0
    %710 = vmatprep.mubr.f32.mxu0 0.0
    %711 = vmatmul.mubr.f32.gmra.mrb[0].mxu0 %v644
    %v712 = vpop.f32.mrb[0].mxu0
    %v713 = vadd.f32 0.0, %v712
    %v714 = vpop.f32.mrb[0].mxu0
    %715 = vdwg.mxu0
    %717 = vrot.lane.b32.xlu0 %v713, 32
    %v718 = vpop.permute.xlu0 %717
    %v720 = vmul.f32 %v208, %v718
    %722 = vrot.lane.b32.xlu0 %v152, 32
    %v723 = vpop.permute.xlu0 %722
    %v725 = vadd.f32 %v720, %v723
    %727 = vrot.lane.b32.xlu0 %v725, 96
    %v728 = vpop.permute.xlu0 %727
    %v729 = vsel %vm217, %v728, 0
    %731 = vmatprep.subr.mxu0 0.0
    %732 = vmatpush1.msra.mxu0 %v213
    %733 = vmatprep.subr.mxu0 0.0
    %734 = vmatpush1.msra.mxu0 %v214
    %735 = vmatprep.subr.mxu0 0.0
    %736 = vmatpush1.msra.mxu0 %v215
    %737 = vmatprep.subr.mxu0 0.0
    %738 = vmatpush1.msra.mxu0 %v216
    %739 = vmatprep.subr.mxu0 0.0
    %740 = vmatpush1.msra.mxu0 0.0
    %741 = vmatprep.subr.mxu0 0.0
    %742 = vmatpush1.msra.mxu0 0.0
    %743 = vmatprep.subr.mxu0 0.0
    %744 = vmatpush1.msra.mxu0 0.0
    %745 = vmatprep.subr.mxu0 0.0
    %746 = vmatpush1.msra.mxu0 0.0
    %747 = vmatprep.subr.mxu0 0.0
    %748 = vmatpush1.msra.mxu0 0.0
    %749 = vmatprep.subr.mxu0 0.0
    %750 = vmatpush1.msra.mxu0 0.0
    %751 = vmatprep.subr.mxu0 0.0
    %752 = vmatpush1.msra.mxu0 0.0
    %753 = vmatprep.subr.mxu0 0.0
    %754 = vmatpush1.msra.mxu0 0.0
    %755 = vmatprep.subr.mxu0 0.0
    %756 = vmatpush1.msra.mxu0 0.0
    %757 = vmatprep.subr.mxu0 0.0
    %758 = vmatpush1.msra.mxu0 0.0
    %759 = vmatprep.subr.mxu0 0.0
    %760 = vmatpush1.msra.mxu0 0.0
    %761 = vmatprep.subr.mxu0 0.0
    %762 = vmatpush1.msra.mxu0 0.0
    %763 = vmatprep.subr.mxu0 0.0
    %764 = vmatpush1.msra.mxu0 0.0
    %765 = vmatprep.subr.mxu0 0.0
    %766 = vmatpush1.msra.mxu0 0.0
    %767 = vmatprep.subr.mxu0 0.0
    %768 = vmatpush1.msra.mxu0 0.0
    %769 = vmatprep.subr.mxu0 0.0
    %770 = vmatpush1.msra.mxu0 0.0
    %771 = vmatprep.subr.mxu0 0.0
    %772 = vmatpush1.msra.mxu0 0.0
    %773 = vmatprep.subr.mxu0 0.0
    %774 = vmatpush1.msra.mxu0 0.0
    %775 = vmatprep.subr.mxu0 0.0
    %776 = vmatpush1.msra.mxu0 0.0
    %777 = vmatprep.subr.mxu0 0.0
    %778 = vmatpush1.msra.mxu0 0.0
    %779 = vmatprep.subr.mxu0 0.0
    %780 = vmatpush1.msra.mxu0 0.0
    %781 = vmatprep.subr.mxu0 0.0
    %782 = vmatpush1.msra.mxu0 0.0
    %783 = vmatprep.subr.mxu0 0.0
    %784 = vmatpush1.msra.mxu0 0.0
    %785 = vmatprep.subr.mxu0 0.0
    %786 = vmatpush1.msra.mxu0 0.0
    %787 = vmatprep.subr.mxu0 0.0
    %788 = vmatpush1.msra.mxu0 0.0
    %789 = vmatprep.subr.mxu0 0.0
    %790 = vmatpush1.msra.mxu0 0.0
    %791 = vmatprep.subr.mxu0 0.0
    %792 = vmatpush1.msra.mxu0 0.0
    %793 = vmatprep.subr.mxu0 0.0
    %794 = vmatpush1.msra.mxu0 0.0
    %795 = vmatprep.mubr.f32.mxu0 0.0
    %796 = vmatmul.mubr.f32.gmra.mrb[0].mxu0 %v729
    %v797 = vpop.f32.mrb[0].mxu0
    %v798 = vadd.f32 0.0, %v797
    %v799 = vpop.f32.mrb[0].mxu0
    %800 = vdwg.mxu0
    %802 = vrot.lane.b32.xlu0 %v798, 32
    %v803 = vpop.permute.xlu0 %802
    %v805 = vmul.f32 %v210, %v803
    %807 = vrot.lane.b32.xlu0 %v157, 32
    %v808 = vpop.permute.xlu0 %807
    %v810 = vadd.f32 %v805, %v808
    %812 = vrot.lane.b32.xlu0 %v810, 96
    %v813 = vpop.permute.xlu0 %812
    %v814 = vsel %vm217, %v813, 0
    %816 = vmatprep.subr.mxu0 0.0
    %817 = vmatpush1.msra.mxu0 %v213
    %818 = vmatprep.subr.mxu0 0.0
    %819 = vmatpush1.msra.mxu0 %v214
    %820 = vmatprep.subr.mxu0 0.0
    %821 = vmatpush1.msra.mxu0 %v215
    %822 = vmatprep.subr.mxu0 0.0
    %823 = vmatpush1.msra.mxu0 %v216
    %824 = vmatprep.subr.mxu0 0.0
    %825 = vmatpush1.msra.mxu0 0.0
    %826 = vmatprep.subr.mxu0 0.0
    %827 = vmatpush1.msra.mxu0 0.0
    %828 = vmatprep.subr.mxu0 0.0
    %829 = vmatpush1.msra.mxu0 0.0
    %830 = vmatprep.subr.mxu0 0.0
    %831 = vmatpush1.msra.mxu0 0.0
    %832 = vmatprep.subr.mxu0 0.0
    %833 = vmatpush1.msra.mxu0 0.0
    %834 = vmatprep.subr.mxu0 0.0
    %835 = vmatpush1.msra.mxu0 0.0
    %836 = vmatprep.subr.mxu0 0.0
    %837 = vmatpush1.msra.mxu0 0.0
    %838 = vmatprep.subr.mxu0 0.0
    %839 = vmatpush1.msra.mxu0 0.0
    %840 = vmatprep.subr.mxu0 0.0
    %841 = vmatpush1.msra.mxu0 0.0
    %842 = vmatprep.subr.mxu0 0.0
    %843 = vmatpush1.msra.mxu0 0.0
    %844 = vmatprep.subr.mxu0 0.0
    %845 = vmatpush1.msra.mxu0 0.0
    %846 = vmatprep.subr.mxu0 0.0
    %847 = vmatpush1.msra.mxu0 0.0
    %848 = vmatprep.subr.mxu0 0.0
    %849 = vmatpush1.msra.mxu0 0.0
    %850 = vmatprep.subr.mxu0 0.0
    %851 = vmatpush1.msra.mxu0 0.0
    %852 = vmatprep.subr.mxu0 0.0
    %853 = vmatpush1.msra.mxu0 0.0
    %854 = vmatprep.subr.mxu0 0.0
    %855 = vmatpush1.msra.mxu0 0.0
    %856 = vmatprep.subr.mxu0 0.0
    %857 = vmatpush1.msra.mxu0 0.0
    %858 = vmatprep.subr.mxu0 0.0
    %859 = vmatpush1.msra.mxu0 0.0
    %860 = vmatprep.subr.mxu0 0.0
    %861 = vmatpush1.msra.mxu0 0.0
    %862 = vmatprep.subr.mxu0 0.0
    %863 = vmatpush1.msra.mxu0 0.0
    %864 = vmatprep.subr.mxu0 0.0
    %865 = vmatpush1.msra.mxu0 0.0
    %866 = vmatprep.subr.mxu0 0.0
    %867 = vmatpush1.msra.mxu0 0.0
    %868 = vmatprep.subr.mxu0 0.0
    %869 = vmatpush1.msra.mxu0 0.0
    %870 = vmatprep.subr.mxu0 0.0
    %871 = vmatpush1.msra.mxu0 0.0
    %872 = vmatprep.subr.mxu0 0.0
    %873 = vmatpush1.msra.mxu0 0.0
    %874 = vmatprep.subr.mxu0 0.0
    %875 = vmatpush1.msra.mxu0 0.0
    %876 = vmatprep.subr.mxu0 0.0
    %877 = vmatpush1.msra.mxu0 0.0
    %878 = vmatprep.subr.mxu0 0.0
    %879 = vmatpush1.msra.mxu0 0.0
    %880 = vmatprep.mubr.f32.mxu0 0.0
    %881 = vmatmul.mubr.f32.gmra.mrb[0].mxu0 %v814
    %v882 = vpop.f32.mrb[0].mxu0
    %v883 = vadd.f32 0.0, %v882
    %v884 = vpop.f32.mrb[0].mxu0
    %885 = vdwg.mxu0
    %887 = vrot.lane.b32.xlu0 %v883, 32
    %v888 = vpop.permute.xlu0 %887
    %v890 = vmul.f32 %v212, %v888
    %892 = vrot.lane.b32.xlu0 %v162, 32
    %v893 = vpop.permute.xlu0 %892
    %v895 = vadd.f32 %v890, %v893
    %897 = vrot.lane.b32.xlu0 %v470, 32
    %v898 = vpop.permute.xlu0 %897
    %900 = vrot.lane.b32.xlu0 %v555, 64
    %v901 = vpop.permute.xlu0 %900
    %904 = vrot.lane.b32.xlu0 %v810, 32
    %v905 = vpop.permute.xlu0 %904
    %908 = vrot.lane.b32.xlu0 %v895, 64
    %v909 = vpop.permute.xlu0 %908
    %v911 = vsel %vm217, %v303, %v385
    %vm912 = vcmask 523264
    %v913 = vsel %vm912, %v911, %v898
    %vm914 = vcmask 785408
    %v915 = vsel %vm914, %v913, %v901
    %v916 = vsel %vm217, %v643, %v725
    %v917 = vsel %vm912, %v916, %v905
    %v918 = vsel %vm914, %v917, %v909
    %919 = vst [vmem:[#allocation2] sm:$0xff] %v915
    %920 = vst [vmem:[#allocation2 + $0x8] sm:$0xff] %v918
    // Predicated region
    $region18: #{tpu_custom_call.1} parent=1 // pred_check
      _
    $region19: #{tpu_custom_call.1} parent=1 // pred_check_branch
      %922 = sbr.rel (0) target = $region21
    $region20: #{tpu_custom_call.1} parent=1 // pred_region
      %s924 = ssub.s32 256, 256
      %925 = vsyncadd [#allocation3], %s924
      %s927 = sshll.u32 [#allocation2], 4
      %s928 = int_to_ptr.vmem [resolvable:$true] %s927
      %930 = dma.vmem_to_hbm [thread:$0]  %s928, 256, %s4, [#allocation3]
    $region21: #{tpu_custom_call.1} parent=1 // pred_fallthru
      _
    // Predicated region
    $region22: #{tpu_custom_call.1} parent=1 // pred_check
      _
    $region23: #{tpu_custom_call.1} parent=1 // pred_check_branch
      %932 = sbr.rel (0) target = $region25
    $region24: #{tpu_custom_call.1} parent=1 // pred_region
      %933 = dma.done [#allocation3], 256
    $region25: #{tpu_custom_call.1} parent=1 // pred_fallthru
      _
    %934 = vsyncpa [#allocation3], 1

</llo_original>
